<compile_context>
chip_gen: v7x
topology: tpu7x:2x2x1
jax: 0.10.0
libtpu: 0.0.40
codegen_flags: <defaults>
</compile_context>

<pallas_src>
import functools

import jax
import jax.numpy as jnp
from jax.experimental import pallas as pl
from jax.experimental.pallas import tpu as pltpu


def self_attention_kernel(x_proj_ref, x_res_ref, w_ref, b_ref, gamma_ref,
                          o_ref, q_scr, kt_scr, v_scr, *, use_bf16_exp):
    # x_proj_ref: (C, N) bf16, resident per batch image (projection input only).
    # x_res_ref : (C, TQ) residual tile (original dtype), pipelined per grid step.
    C, TQ = o_ref.shape
    C8 = q_scr.shape[0]
    N = v_scr.shape[1]
    qi = pl.program_id(1)

    # ---- fused 1x1-conv projections: once per batch image --------------------------
    @pl.when(qi == 0)
    def _project():
        # Single natural-form MXU pass: (C+2*C8, C) @ (C, N) -> [V; K; Q] channels-major.
        p_all = jax.lax.dot_general(
            w_ref[...], x_proj_ref[...], (((1,), (0,)), ((), ())),
            preferred_element_type=jnp.float32)
        p_all = p_all + b_ref[...]                               # fused bias (C+2*C8, 1)
        v_scr[...] = p_all[:C, :].astype(jnp.bfloat16)           # V     (C,  N)
        q_scr[...] = p_all[C + C8:, :].astype(jnp.bfloat16)      # Q     (C8, N)
        # K tokens-major so both attention matmuls below are natural-form.
        kt_scr[...] = jnp.transpose(
            p_all[C:C + C8, :]).astype(jnp.bfloat16)             # K_tok (N, C8)

    # ---- attention for this query tile ----------------------------------------------
    start = pl.multiple_of(qi * TQ, TQ)
    q_tile = q_scr[:, pl.ds(start, TQ)]                          # (C8, TQ) bf16

    # logits[j, i] = sum_c k[c, j] * q[c, i]  (keys on sublanes, queries on lanes)
    logits = jax.lax.dot_general(
        kt_scr[...], q_tile, (((1,), (0,)), ((), ())),
        preferred_element_type=jnp.float32)                      # (N, TQ) f32

    # softmax over keys (axis 0); normalization deferred to the (C, TQ) output.
    m = jnp.max(logits, axis=0, keepdims=True)                   # (1, TQ) f32
    d = logits - m
    if use_bf16_exp:                                             # v6e/v7x: bf16 EUP
        e = jnp.exp(d.astype(jnp.bfloat16))                      # (N, TQ) bf16, e <= 1
        s = jnp.sum(e.astype(jnp.float32), axis=0, keepdims=True)
        p = e
    else:                                                        # v5e: f32 VPU/EUP only
        e = jnp.exp(d)
        s = jnp.sum(e, axis=0, keepdims=True)
        p = e.astype(jnp.bfloat16)

    # out[c, i] = sum_j v[c, j] * p[j, i]   (natural-form PV contraction)
    out = jax.lax.dot_general(
        v_scr[...], p, (((1,), (0,)), ((), ())),
        preferred_element_type=jnp.float32)                      # (C, TQ) f32

    # Deferred normalization + gamma folded into one (1, TQ) scale vector.
    scale = gamma_ref[0] * pl.reciprocal(s, approx=False)        # (1, TQ)
    o_ref[...] = (out * scale +
                  x_res_ref[...].astype(jnp.float32)).astype(o_ref.dtype)


def _device_kind():
    try:
        return jax.devices()[0].device_kind.lower()
    except Exception:
        return ""


def _pick_tq(n, prefer_large_tiles):
    """Largest query tile in {512, 256, 128} dividing N (cap 256 on small-VMEM chips)."""
    cap = 512 if (prefer_large_tiles or n < 2048) else 256
    for tq in (512, 256, 128):
        if tq <= cap and n % tq == 0 and tq < n:
            return tq
    return n


def self_attention_pallas(x_nchw, wq, wk, wv, bq, bk, bv, gamma):
    """x_nchw: (B, C, H, W). wq/wk: (C, C//8), wv: (C, C) [(in, out) layout],
    biases 1-D, gamma: (1,)."""
    B, C, H, W = x_nchw.shape
    N = H * W
    C8 = wq.shape[1]
    assert C % 8 == 0, "C must be a multiple of 8 (f32 sublane tile / C//8 projection)"
    assert wk.shape == (C, C8) and wv.shape == (C, C)

    kind = _device_kind()
    big_vmem = ("v5" in kind) or ("v6" in kind)       # 128 MiB VMEM generations
    use_bf16_exp = ("v6" in kind) or ("v7" in kind)   # bf16 VPU/EUP available

    TQ = _pick_tq(N, big_vmem)
    assert N % TQ == 0

    # NCHW -> (B, C, N): pure reshape, no data movement.
    x_cm = x_nchw.reshape(B, C, N)
    # bf16 copy used only by the per-batch projection (halves the resident VMEM block).
    x_proj = x_cm.astype(jnp.bfloat16)

    # Fused, pre-transposed projection weight [Wv; Wk; Wq]^T: (C + 2*C8, C), bf16 MXU
    # operands; fused bias stays f32 (added to the f32 accumulator).
    w_all_t = jnp.concatenate([wv.T, wk.T, wq.T], axis=0).astype(jnp.bfloat16)
    b_all = jnp.concatenate([bv, bk, bq]).astype(jnp.float32).reshape(C + 2 * C8, 1)

    grid = (B, N // TQ)
    kernel = functools.partial(self_attention_kernel, use_bf16_exp=use_bf16_exp)

    cost = pl.CostEstimate(
        flops=int(2 * B * N * N * (C + C8) + 2 * B * (C + 2 * C8) * C * N),
        transcendentals=int(B * N * N),
        bytes_accessed=int(B * C * N * (2 + 4 + 4)
                           + w_all_t.size * 2 + b_all.size * 4),
    )

    # Note (v7x): with B == 1 only one of the two TensorCores is used, because the
    # query-tile axis carries the projection scratch and must stay "arbitrary".
    # Hoisting the projections out of this kernel would let qi be "parallel".
    out_cm = pl.pallas_call(
        kernel,
        out_shape=jax.ShapeDtypeStruct((B, C, N), x_nchw.dtype),
        grid=grid,
        in_specs=[
            # bf16 x: full image per batch, resident across query tiles (projection only)
            pl.BlockSpec((pl.Squeezed(), C, N), lambda b, qi: (b, 0, 0)),
            # f32 residual tile, normally pipelined per grid step
            pl.BlockSpec((pl.Squeezed(), C, TQ), lambda b, qi: (b, 0, qi)),
            pl.BlockSpec((C + 2 * C8, C), lambda b, qi: (0, 0)),    # [Wv;Wk;Wq]^T (bf16)
            pl.BlockSpec((C + 2 * C8, 1), lambda b, qi: (0, 0)),    # fused bias   (f32)
            pl.BlockSpec(memory_space=pltpu.MemorySpace.SMEM),      # gamma scalar
        ],
        out_specs=pl.BlockSpec((pl.Squeezed(), C, TQ), lambda b, qi: (b, 0, qi)),
        scratch_shapes=[
            pltpu.VMEM((C8, N), jnp.bfloat16),   # Q     channels-major
            pltpu.VMEM((N, C8), jnp.bfloat16),   # K_tok tokens-major
            pltpu.VMEM((C, N), jnp.bfloat16),    # V     channels-major
        ],
        compiler_params=pltpu.CompilerParams(
            # Batch axis feeds the megacore; the query-tile axis carries Q/K/V scratch,
            # so it must stay "arbitrary" (sequential per core).
            dimension_semantics=("parallel", "arbitrary"),
            vmem_limit_bytes=(96 if big_vmem else 48) * 1024 * 1024,
        ),
        cost_estimate=cost,
    )(x_proj, x_cm, w_all_t, b_all, gamma.astype(jnp.float32))

    # (B, C, N) -> NCHW: pure reshape.
    return out_cm.reshape(B, C, H, W)


def self_attention_ref(x, wq, wk, wv, bq, bk, bv, gamma):
    """Pure-JAX f32 reference mirroring the PyTorch forward literally (NCHW)."""
    B, C, H, W = x.shape
    N = H * W
    xf = x.reshape(B, C, N)
    q = jnp.einsum('co,bcn->bon', wq, xf) + bq[None, :, None]   # (B, C8, N)
    k = jnp.einsum('co,bcn->bon', wk, xf) + bk[None, :, None]   # (B, C8, N)
    v = jnp.einsum('co,bcn->bon', wv, xf) + bv[None, :, None]   # (B, C,  N)
    q_t = jnp.transpose(q, (0, 2, 1))                           # (B, N, C8)
    attn = jnp.einsum('bio,boj->bij', q_t, k)                   # (B, N, N)
    attn = jax.nn.softmax(attn, axis=-1)
    out = jnp.einsum('bcj,bij->bci', v, attn)                   # (B, C, N)
    out = out.reshape(B, C, H, W)
    return gamma[0] * out + x


if __name__ == "__main__":
    # Small but representative: C divisible by 8 (C//8 = 8), N = 256 -> 2 query tiles.
    B, C, H, W = 2, 64, 16, 16
    C8 = C // 8

    key = jax.random.PRNGKey(0)
    kx, kwq, kwk, kwv, kbq, kbk, kbv = jax.random.split(key, 7)

    x = jax.random.normal(kx, (B, C, H, W), jnp.float32)
    wq = 0.1 * jax.random.normal(kwq, (C, C8), jnp.float32)
    wk = 0.1 * jax.random.normal(kwk, (C, C8), jnp.float32)
    wv = 0.1 * jax.random.normal(kwv, (C, C), jnp.float32)
    bq = 0.1 * jax.random.normal(kbq, (C8,), jnp.float32)
    bk = 0.1 * jax.random.normal(kbk, (C8,), jnp.float32)
    bv = 0.1 * jax.random.normal(kbv, (C,), jnp.float32)
    # PyTorch inits gamma = 0 (output would equal x); use a nonzero deterministic
    # value so the attention path is actually exercised.
    gamma = jnp.array([0.5], jnp.float32)

    y = self_attention_pallas(x, wq, wk, wv, bq, bk, bv, gamma)
    y = jax.block_until_ready(y)

    y_ref = self_attention_ref(x, wq, wk, wv, bq, bk, bv, gamma)
    assert y.shape == (B, C, H, W)
    err = float(jnp.max(jnp.abs(y - y_ref)))
    # bf16 MXU operands (+ bf16 exp on v6e/v7x) with f32 accumulation -> relaxed tolerance.
    assert jnp.allclose(y, y_ref, rtol=1e-2, atol=2e-2), \
        f"mismatch vs reference, max abs err {err}"

    print("KERNEL_OK")
</pallas_src>

<mosaic_0001>
module attributes {stable_mosaic.version = 11 : i64} {
  func.func @self_attention_kernel(%arg0: i32, %arg1: i32, %arg2: memref<1x64x256xbf16, #tpu.memory_space<vmem>>, %arg3: memref<1x64x128xf32, #tpu.memory_space<vmem>>, %arg4: memref<80x64xbf16, #tpu.memory_space<vmem>>, %arg5: memref<80x1xf32, #tpu.memory_space<vmem>>, %arg6: memref<1xf32, #tpu.memory_space<smem>>, %arg7: memref<1x64x128xf32, #tpu.memory_space<vmem>>, %arg8: memref<8x256xbf16, #tpu.memory_space<vmem>>, %arg9: memref<256x8xbf16, #tpu.memory_space<vmem>>, %arg10: memref<64x256xbf16, #tpu.memory_space<vmem>>) attributes {dimension_semantics = [#tpu.dimension_semantics<parallel>, #tpu.dimension_semantics<arbitrary>], iteration_bounds = array<i64: 2, 2>, scalar_prefetch = 0 : i64, scratch_operands = 3 : i64, tpu.core_type = #tpu.core_type<tc>, window_params = [{transform_indices = @transform_0, window_bounds = array<i64: 1, 64, 256>}, {transform_indices = @transform_1, window_bounds = array<i64: 1, 64, 128>}, {pipeline_mode = #tpu.pipeline_mode<synchronous>, transform_indices = @transform_2, window_bounds = array<i64: 80, 64>}, {pipeline_mode = #tpu.pipeline_mode<synchronous>, transform_indices = @transform_3, window_bounds = array<i64: 80, 1>}, {transform_indices = @transform_4, window_bounds = array<i64: 1>}, {transform_indices = @transform_5, window_bounds = array<i64: 1, 64, 128>}]} {
    %c0_i32 = arith.constant 0 : i32
    %0 = arith.cmpi eq, %arg1, %c0_i32 : i32
    %1 = arith.extui %0 : i1 to i32
    %c0_i32_0 = arith.constant 0 : i32
    %2 = arith.cmpi ne, %1, %c0_i32_0 : i32
    scf.if %2 {
      %c0_15 = arith.constant 0 : index
      %c0_16 = arith.constant 0 : index
      %31 = vector.load %arg4[%c0_15, %c0_16] : memref<80x64xbf16, #tpu.memory_space<vmem>>, vector<80x64xbf16>
      %c0_17 = arith.constant 0 : index
      %c0_18 = arith.constant 0 : index
      %c0_19 = arith.constant 0 : index
      %32 = vector.load %arg2[%c0_17, %c0_18, %c0_19] : memref<1x64x256xbf16, #tpu.memory_space<vmem>>, vector<1x64x256xbf16>
      %33 = vector.shape_cast %32 : vector<1x64x256xbf16> to vector<64x256xbf16>
      %cst_20 = arith.constant dense<0.000000e+00> : vector<80x256xf32>
      %34 = tpu.matmul %31, %33, %cst_20 {dimension_numbers = #tpu.dot_dimension_numbers<[1], [0], [0], [1], [0, 0, 1, 1], [], []>} : vector<80x64xbf16>, vector<64x256xbf16>, vector<80x256xf32> -> vector<80x256xf32>
      %c0_21 = arith.constant 0 : index
      %c0_22 = arith.constant 0 : index
      %35 = vector.load %arg5[%c0_21, %c0_22] : memref<80x1xf32, #tpu.memory_space<vmem>>, vector<80x1xf32>
      %36 = vector.broadcast %35 : vector<80x1xf32> to vector<80x256xf32>
      %37 = arith.addf %34, %36 : vector<80x256xf32>
      %38 = vector.extract_strided_slice %37 {offsets = [0, 0], sizes = [64, 256], strides = [1, 1]} : vector<80x256xf32> to vector<64x256xf32>
      %39 = arith.truncf %38 : vector<64x256xf32> to vector<64x256xbf16>
      %c0_23 = arith.constant 0 : index
      %c0_24 = arith.constant 0 : index
      %40 = vector.load %arg10[%c0_23, %c0_24] : memref<64x256xbf16, #tpu.memory_space<vmem>>, vector<64x256xbf16>
      tpu.vector_store %arg10[%c0_23, %c0_24], %39 {strides = array<i32>} : memref<64x256xbf16, #tpu.memory_space<vmem>>, vector<64x256xbf16>,
      %41 = vector.extract_strided_slice %37 {offsets = [72, 0], sizes = [8, 256], strides = [1, 1]} : vector<80x256xf32> to vector<8x256xf32>
      %42 = arith.truncf %41 : vector<8x256xf32> to vector<8x256xbf16>
      %c0_25 = arith.constant 0 : index
      %c0_26 = arith.constant 0 : index
      %43 = vector.load %arg8[%c0_25, %c0_26] : memref<8x256xbf16, #tpu.memory_space<vmem>>, vector<8x256xbf16>
      tpu.vector_store %arg8[%c0_25, %c0_26], %42 {strides = array<i32>} : memref<8x256xbf16, #tpu.memory_space<vmem>>, vector<8x256xbf16>,
      %44 = vector.extract_strided_slice %37 {offsets = [64, 0], sizes = [8, 256], strides = [1, 1]} : vector<80x256xf32> to vector<8x256xf32>
      %45 = tpu.transpose %44, [1, 0] : vector<8x256xf32> -> vector<256x8xf32>
      %46 = arith.truncf %45 : vector<256x8xf32> to vector<256x8xbf16>
      %c0_27 = arith.constant 0 : index
      %c0_28 = arith.constant 0 : index
      %47 = vector.load %arg9[%c0_27, %c0_28] : memref<256x8xbf16, #tpu.memory_space<vmem>>, vector<256x8xbf16>
      tpu.vector_store %arg9[%c0_27, %c0_28], %46 {strides = array<i32>} : memref<256x8xbf16, #tpu.memory_space<vmem>>, vector<256x8xbf16>,
    } else {
    }
    %c128_i32 = arith.constant 128 : i32
    %3 = arith.muli %arg1, %c128_i32 : i32
    %4 = tpu.assume_multiple %3, 128 : i32
    %c0 = arith.constant 0 : index
    %5 = arith.index_cast %4 : i32 to index
    %6 = vector.load %arg8[%c0, %5] : memref<8x256xbf16, #tpu.memory_space<vmem>>, vector<8x128xbf16>
    %c0_1 = arith.constant 0 : index
    %c0_2 = arith.constant 0 : index
    %7 = vector.load %arg9[%c0_1, %c0_2] : memref<256x8xbf16, #tpu.memory_space<vmem>>, vector<256x8xbf16>
    %cst = arith.constant dense<0.000000e+00> : vector<256x128xf32>
    %8 = tpu.matmul %7, %6, %cst {dimension_numbers = #tpu.dot_dimension_numbers<[1], [0], [0], [1], [0, 0, 1, 1], [], []>} : vector<256x8xbf16>, vector<8x128xbf16>, vector<256x128xf32> -> vector<256x128xf32>
    %cst_3 = arith.constant dense<0xFF800000> : vector<128xf32>
    %9 = vector.multi_reduction <maximumf>, %8, %cst_3 [0] : vector<256x128xf32> to vector<128xf32>
    %10 = vector.shape_cast %9 : vector<128xf32> to vector<1x128xf32>
    %11 = vector.broadcast %10 : vector<1x128xf32> to vector<256x128xf32>
    %12 = arith.subf %8, %11 : vector<256x128xf32>
    %13 = math.exp %12 : vector<256x128xf32>
    %cst_4 = arith.constant dense<0.000000e+00> : vector<128xf32>
    %14 = vector.multi_reduction <add>, %13, %cst_4 [0] : vector<256x128xf32> to vector<128xf32>
    %15 = vector.shape_cast %14 : vector<128xf32> to vector<1x128xf32>
    %16 = arith.truncf %13 : vector<256x128xf32> to vector<256x128xbf16>
    %c0_5 = arith.constant 0 : index
    %c0_6 = arith.constant 0 : index
    %17 = vector.load %arg10[%c0_5, %c0_6] : memref<64x256xbf16, #tpu.memory_space<vmem>>, vector<64x256xbf16>
    %cst_7 = arith.constant dense<0.000000e+00> : vector<64x128xf32>
    %18 = tpu.matmul %17, %16, %cst_7 {dimension_numbers = #tpu.dot_dimension_numbers<[1], [0], [0], [1], [0, 0, 1, 1], [], []>} : vector<64x256xbf16>, vector<256x128xbf16>, vector<64x128xf32> -> vector<64x128xf32>
    %c0_8 = arith.constant 0 : index
    %19 = memref.load %arg6[%c0_8] : memref<1xf32, #tpu.memory_space<smem>>
    %20 = tpu.reciprocal %15 : vector<1x128xf32> -> vector<1x128xf32>
    %21 = vector.broadcast %19 : f32 to vector<1x128xf32>
    %22 = arith.mulf %21, %20 : vector<1x128xf32>
    %23 = vector.broadcast %22 : vector<1x128xf32> to vector<64x128xf32>
    %24 = arith.mulf %18, %23 : vector<64x128xf32>
    %c0_9 = arith.constant 0 : index
    %c0_10 = arith.constant 0 : index
    %c0_11 = arith.constant 0 : index
    %25 = vector.load %arg3[%c0_9, %c0_10, %c0_11] : memref<1x64x128xf32, #tpu.memory_space<vmem>>, vector<1x64x128xf32>
    %26 = vector.shape_cast %25 : vector<1x64x128xf32> to vector<64x128xf32>
    %27 = arith.addf %24, %26 : vector<64x128xf32>
    %c0_12 = arith.constant 0 : index
    %c0_13 = arith.constant 0 : index
    %c0_14 = arith.constant 0 : index
    %28 = vector.load %arg7[%c0_12, %c0_13, %c0_14] : memref<1x64x128xf32, #tpu.memory_space<vmem>>, vector<1x64x128xf32>
    %29 = vector.shape_cast %28 : vector<1x64x128xf32> to vector<64x128xf32>
    %30 = vector.shape_cast %27 : vector<64x128xf32> to vector<1x64x128xf32>
    tpu.vector_store %arg7[%c0_12, %c0_13, %c0_14], %30 {strides = array<i32>} : memref<1x64x128xf32, #tpu.memory_space<vmem>>, vector<1x64x128xf32>,
    return
  }
  func.func @transform_0(%arg0: i32, %arg1: i32) -> (i32, i32, i32) {
    %c0_i32 = arith.constant 0 : i32
    %c0_i32_0 = arith.constant 0 : i32
    %c0_i32_1 = arith.constant 0 : i32
    return %arg0, %c0_i32, %c0_i32_0 : i32, i32, i32
  }
  func.func @transform_1(%arg0: i32, %arg1: i32) -> (i32, i32, i32) {
    %c0_i32 = arith.constant 0 : i32
    %c0_i32_0 = arith.constant 0 : i32
    return %arg0, %c0_i32, %arg1 : i32, i32, i32
  }
  func.func @transform_2(%arg0: i32, %arg1: i32) -> (i32, i32) {
    %c0_i32 = arith.constant 0 : i32
    %c0_i32_0 = arith.constant 0 : i32
    %c0_i32_1 = arith.constant 0 : i32
    return %c0_i32, %c0_i32_0 : i32, i32
  }
  func.func @transform_3(%arg0: i32, %arg1: i32) -> (i32, i32) {
    %c0_i32 = arith.constant 0 : i32
    %c0_i32_0 = arith.constant 0 : i32
    %c0_i32_1 = arith.constant 0 : i32
    return %c0_i32, %c0_i32_0 : i32, i32
  }
  func.func @transform_4(%arg0: i32, %arg1: i32) -> i32 {
    %c0_i32 = arith.constant 0 : i32
    %c0_i32_0 = arith.constant 0 : i32
    return %c0_i32 : i32
  }
  func.func @transform_5(%arg0: i32, %arg1: i32) -> (i32, i32, i32) {
    %c0_i32 = arith.constant 0 : i32
    %c0_i32_0 = arith.constant 0 : i32
    return %arg0, %c0_i32, %arg1 : i32, i32, i32
  }
}

</mosaic_0001>

<llo_original>
// kernel: tpu_custom_call.1
$region0: #{tpu_custom_call.1}
  #allocation0 [shape = 'u32[]', space=smem, size = 0x4, offset = 0x4, fixed_abs, tag = 'smem constant byte address 0x4 - core index']
  #allocation1 [shape = 'u32[144,128]{1,0:T(1,128)}', space=vmem, size = 0x12000, scoped, tag = 'internal scratch']
  #allocation2 [shape = 'bf16[8,256]{1,0:T(8,128)(2,1)}', space=vmem, size = 0x1000, scoped, tag = 'scratch operand']
  #allocation3 [shape = 'bf16[256,8]{1,0:T(16,128)(2,1)}', space=vmem, size = 0x10000, scoped, tag = 'scratch operand']
  #allocation4 [shape = 'bf16[64,256]{1,0:T(16,128)(2,1)}', space=vmem, size = 0x8000, scoped, tag = 'scratch operand']
  #allocation5 [shape = 'f32[1]{0:T(128)S(6)}', space=smem, size = 0x200, scoped, tag = 'scoped memory for tpu_custom_call.1']
  %s0 = inlined_call_operand.vmem [shape: bf16[2,64,256], index: 0, kind: input, shape index: {}]
  %s1 = inlined_call_operand.hbm [shape: f32[2,64,256], index: 1, kind: input, shape index: {}]
  %s2 = inlined_call_operand.vmem [shape: bf16[80,64], index: 2, kind: input, shape index: {}]
  %s3 = inlined_call_operand.vmem [shape: f32[80,1], index: 3, kind: input, shape index: {}]
  %s4 = inlined_call_operand.<no memory space> [shape: f32[1], index: 4, kind: input, shape index: {}]
  %s5 = inlined_call_operand.hbm [shape: f32[2,64,256], index: 5, kind: output, shape index: {}]
  %s6 = sld [smem:[#allocation0]]
  $region61: #{tpu_custom_call.1} parent=0
    _
  %s8 = ssub.s32 1, %s6
  %s9 = scalar_select 0, %s8, %s6
  %10 = sst [smem:[#allocation5]] %s4
  $region1: #{tpu_custom_call.1} parent=0
    #allocation6 [shape = 'u8[65536]{0}', space=vmem, size = 0x10000, scoped, tag = 'input window, operand 1']
    #allocation7 [shape = 's32[2]{0}', space=sflag, size = 0x8, scoped, tag = 'scoped memory for tpu_custom_call.1']
    #allocation8 [shape = 's32[2]{0}', space=sflag, size = 0x8, scoped, tag = 'scoped memory for tpu_custom_call.1']
    #allocation9 [shape = 'u8[65536]{0}', space=vmem, size = 0x10000, scoped, tag = 'output window, operand 0']
    %11 = vsyncpa [#allocation7], 0
    %s12 = scalar_lea.sflag [#allocation7], 1
    %13 = vsyncpa %s12, 0
    %14 = vsyncpa [#allocation8], 0
    %s15 = scalar_lea.sflag [#allocation8], 1
    %16 = vsyncpa %s15, 0
    loop: start=0, step=1, limit=6
    $region2: #{tpu_custom_call.1} parent=1 // loop_pre_header
      _
    $region3: #{tpu_custom_call.1} parent=1 // loop_header
      %s18 = sphi 0, %s22
      %p19 = scmp.ge.s32.totalorder %s18, 6
      %s25 = sphi 0, %s37
      %s26 = sphi 0, %s33
      %s27 = sphi 0, %s25
      %s28 = sphi 0, %s26
      %s29 = sphi 0, %s27
      %s30 = sphi 0, %s28
      %s40 = sphi 0, %s42
      %s43 = sphi 0, %s40
      %s44 = sphi 0, %s43
      %s60 = sphi 0, %s44
      %s68 = sphi 0, %s70
      %s71 = sphi 0, %s68
      %s72 = sphi 0, %s71
      %s88 = sphi 0, %s72
      %s92 = sphi 0, %s92
      %s94 = sphi 0, %s92
      %s95 = sphi 0, %s94
      %s109 = sphi 0, %s95
      %s113 = sphi 0, %s113
      %s115 = sphi 0, %s113
      %s116 = sphi 0, %s115
      %s130 = sphi 0, %s116
      %s134 = sphi 0, %s134
      %s136 = sphi 0, %s134
      %s137 = sphi 0, %s136
      %s151 = sphi 0, %s137
      %s159 = sphi 0, %s161
      %s162 = sphi 0, %s159
      %s163 = sphi 0, %s162
      %s179 = sphi 0, %s163
    $region4: #{tpu_custom_call.1} parent=1 // loop_header_branch
      %21 = sbr.rel (%p19) target = $region8
    $region5: #{tpu_custom_call.1} parent=1 // loop_body
      %s23 = ssub.s32 %s18, 1
      %s24 = ssub.s32 %s18, 2
      %s31 = sadd.s32 1, %s26
      %p32 = scmp.ge.s32.totalorder %s31, 2
      %s33 = scalar_select %p32, 0, %s31
      %s34 = sadd.s32 1, %s25
      %s35 = scalar_select %p32, %s34, %s25
      %p36 = scmp.ge.s32.totalorder %s35, 2
      %s37 = scalar_select %p36, 0, %s35
      %s38 = ssub.s32 %s25, %s37
      %p39 = scmp.eq.s32.totalorder %s38, 0
      %s41 = sadd.s32 %s40, 1
      %s42 = scalar_select %p39, %s40, %s41
      %p45 = pneg %p39
      %p46 = scmp.eq.s32.totalorder %s18, 3
      %p47 = por %p45, %p46
      %p48 = scmp.ne.s32.totalorder %s40, %s43
      %p49 = scmp.eq.s32.totalorder %s18, 0
      %p50 = por %p48, %p49
      %p51 = scmp.ne.s32.totalorder %s40, %s43
      %p52 = scmp.eq.s32.totalorder %s23, 3
      %p53 = por %p51, %p52
      %p54 = scmp.ne.s32.totalorder %s43, %s44
      %p55 = scmp.eq.s32.totalorder %s23, 0
      %p56 = por %p54, %p55
      %p57 = scmp.ne.s32.totalorder %s43, %s44
      %p58 = scmp.eq.s32.totalorder %s24, 3
      %p59 = por %p57, %p58
      %p61 = scmp.ne.s32.totalorder %s44, %s60
      %p62 = scmp.eq.s32.totalorder %s24, 0
      %p63 = por %p61, %p62
      %s64 = ssub.s32 %s25, %s37
      %s65 = ssub.s32 %s26, %s33
      %s66 = sor.u32 %s64, %s65
      %p67 = scmp.eq.s32.totalorder %s66, 0
      %s69 = sadd.s32 %s68, 1
      %s70 = scalar_select %p67, %s68, %s69
      %p73 = pneg %p67
      %p74 = scmp.eq.s32.totalorder %s18, 3
      %p75 = por %p73, %p74
      %p76 = scmp.ne.s32.totalorder %s68, %s71
      %p77 = scmp.eq.s32.totalorder %s18, 0
      %p78 = por %p76, %p77
      %p79 = scmp.ne.s32.totalorder %s68, %s71
      %p80 = scmp.eq.s32.totalorder %s23, 3
      %p81 = por %p79, %p80
      %p82 = scmp.ne.s32.totalorder %s71, %s72
      %p83 = scmp.eq.s32.totalorder %s23, 0
      %p84 = por %p82, %p83
      %p85 = scmp.ne.s32.totalorder %s71, %s72
      %p86 = scmp.eq.s32.totalorder %s24, 3
      %p87 = por %p85, %p86
      %p89 = scmp.ne.s32.totalorder %s72, %s88
      %p90 = scmp.eq.s32.totalorder %s24, 0
      %p91 = por %p89, %p90
      %s93 = sadd.s32 %s92, 1
      %p96 = scmp.eq.s32.totalorder %s18, 3
      %p97 = scmp.ne.s32.totalorder %s92, %s94
      %p98 = scmp.eq.s32.totalorder %s18, 0
      %p99 = por %p97, %p98
      %p100 = scmp.ne.s32.totalorder %s92, %s94
      %p101 = scmp.eq.s32.totalorder %s23, 3
      %p102 = por %p100, %p101
      %p103 = scmp.ne.s32.totalorder %s94, %s95
      %p104 = scmp.eq.s32.totalorder %s23, 0
      %p105 = por %p103, %p104
      %p106 = scmp.ne.s32.totalorder %s94, %s95
      %p107 = scmp.eq.s32.totalorder %s24, 3
      %p108 = por %p106, %p107
      %p110 = scmp.ne.s32.totalorder %s95, %s109
      %p111 = scmp.eq.s32.totalorder %s24, 0
      %p112 = por %p110, %p111
      %s114 = sadd.s32 %s113, 1
      %p117 = scmp.eq.s32.totalorder %s18, 3
      %p118 = scmp.ne.s32.totalorder %s113, %s115
      %p119 = scmp.eq.s32.totalorder %s18, 0
      %p120 = por %p118, %p119
      %p121 = scmp.ne.s32.totalorder %s113, %s115
      %p122 = scmp.eq.s32.totalorder %s23, 3
      %p123 = por %p121, %p122
      %p124 = scmp.ne.s32.totalorder %s115, %s116
      %p125 = scmp.eq.s32.totalorder %s23, 0
      %p126 = por %p124, %p125
      %p127 = scmp.ne.s32.totalorder %s115, %s116
      %p128 = scmp.eq.s32.totalorder %s24, 3
      %p129 = por %p127, %p128
      %p131 = scmp.ne.s32.totalorder %s116, %s130
      %p132 = scmp.eq.s32.totalorder %s24, 0
      %p133 = por %p131, %p132
      %s135 = sadd.s32 %s134, 1
      %p138 = scmp.eq.s32.totalorder %s18, 3
      %p139 = scmp.ne.s32.totalorder %s134, %s136
      %p140 = scmp.eq.s32.totalorder %s18, 0
      %p141 = por %p139, %p140
      %p142 = scmp.ne.s32.totalorder %s134, %s136
      %p143 = scmp.eq.s32.totalorder %s23, 3
      %p144 = por %p142, %p143
      %p145 = scmp.ne.s32.totalorder %s136, %s137
      %p146 = scmp.eq.s32.totalorder %s23, 0
      %p147 = por %p145, %p146
      %p148 = scmp.ne.s32.totalorder %s136, %s137
      %p149 = scmp.eq.s32.totalorder %s24, 3
      %p150 = por %p148, %p149
      %p152 = scmp.ne.s32.totalorder %s137, %s151
      %p153 = scmp.eq.s32.totalorder %s24, 0
      %p154 = por %p152, %p153
      %s155 = ssub.s32 %s25, %s37
      %s156 = ssub.s32 %s26, %s33
      %s157 = sor.u32 %s155, %s156
      %p158 = scmp.eq.s32.totalorder %s157, 0
      %s160 = sadd.s32 %s159, 1
      %s161 = scalar_select %p158, %s159, %s160
      %p164 = pneg %p158
      %p165 = scmp.eq.s32.totalorder %s18, 3
      %p166 = por %p164, %p165
      %p167 = scmp.ne.s32.totalorder %s159, %s162
      %p168 = scmp.eq.s32.totalorder %s18, 0
      %p169 = por %p167, %p168
      %p170 = scmp.ne.s32.totalorder %s159, %s162
      %p171 = scmp.eq.s32.totalorder %s23, 3
      %p172 = por %p170, %p171
      %p173 = scmp.ne.s32.totalorder %s162, %s163
      %p174 = scmp.eq.s32.totalorder %s23, 0
      %p175 = por %p173, %p174
      %p176 = scmp.ne.s32.totalorder %s162, %s163
      %p177 = scmp.eq.s32.totalorder %s24, 3
      %p178 = por %p176, %p177
      %p180 = scmp.ne.s32.totalorder %s163, %s179
      %p181 = scmp.eq.s32.totalorder %s24, 0
      %p182 = por %p180, %p181
      %p183 = scmp.le.s32.totalorder 1, %s18
      %p184 = scmp.lt.s32.totalorder %s18, 5
      %p185 = pnand %p183, %p184
      %p186 = pneg %p185
      // Predicated region
      $region9: #{tpu_custom_call.1} parent=5 // pred_check
        _
      $region10: #{tpu_custom_call.1} parent=5 // pred_check_branch
        %188 = sbr.rel (%p185) target = $region12
      $region11: #{tpu_custom_call.1} parent=5 // pred_region
        %s189 = ssub.s32 %s18, 1
        // Predicated region
        $region13: #{tpu_custom_call.1} parent=11 // pred_check
          %p190 = pneg %p105
        $region14: #{tpu_custom_call.1} parent=11 // pred_check_branch
          %192 = sbr.rel (%p190) target = $region16
        $region15: #{tpu_custom_call.1} parent=11 // pred_region
          _
        $region16: #{tpu_custom_call.1} parent=11 // pred_fallthru
          _
        // Predicated region
        $region17: #{tpu_custom_call.1} parent=11 // pred_check
          %p193 = pneg %p126
        $region18: #{tpu_custom_call.1} parent=11 // pred_check_branch
          %195 = sbr.rel (%p193) target = $region20
        $region19: #{tpu_custom_call.1} parent=11 // pred_region
          _
        $region20: #{tpu_custom_call.1} parent=11 // pred_fallthru
          _
        // Predicated region
        $region21: #{tpu_custom_call.1} parent=11 // pred_check
          %p196 = pneg %p147
        $region22: #{tpu_custom_call.1} parent=11 // pred_check_branch
          %198 = sbr.rel (%p196) target = $region24
        $region23: #{tpu_custom_call.1} parent=11 // pred_region
          _
        $region24: #{tpu_custom_call.1} parent=11 // pred_fallthru
          _
      $region12: #{tpu_custom_call.1} parent=5 // pred_fallthru
        _
      %p199 = scmp.lt.s32.totalorder %s18, 4
      // Predicated region
      $region25: #{tpu_custom_call.1} parent=5 // pred_check
        %p200 = pneg %p199
      $region26: #{tpu_custom_call.1} parent=5 // pred_check_branch
        %202 = sbr.rel (%p200) target = $region28
      $region27: #{tpu_custom_call.1} parent=5 // pred_region
        // Predicated region
        $region29: #{tpu_custom_call.1} parent=27 // pred_check
          %p203 = pneg %p50
        $region30: #{tpu_custom_call.1} parent=27 // pred_check_branch
          %205 = sbr.rel (%p203) target = $region32
        $region31: #{tpu_custom_call.1} parent=27 // pred_region
          %p206 = scmp.lt.s32.totalorder %s25, 1
          %s207 = scalar_select %p206, %s25, 1
          %s208 = smul.addr %s207, 16
          %s209 = smul.addr %s208, 4
          %s210 = scalar_lea.vmem %s0, %s209
        $region32: #{tpu_custom_call.1} parent=27 // pred_fallthru
          _
        // Predicated region
        $region33: #{tpu_custom_call.1} parent=27 // pred_check
          %p211 = pneg %p78
        $region34: #{tpu_custom_call.1} parent=27 // pred_check_branch
          %213 = sbr.rel (%p211) target = $region36
        $region35: #{tpu_custom_call.1} parent=27 // pred_region
          %s214 = sand.u32 %s68, 1
          %s215 = scalar_lea.sflag [#allocation7], %s214
          %s216 = sand.u32 %s68, 1
          %s217 = smul.addr %s216, 64
          %s218 = scalar_lea.vmem [#allocation6], %s217
          %s220 = ssub.s32 1024, 1024
          %221 = vsyncadd %s215, %s220
          %s222 = smul.addr %s25, 16
          %s223 = sadd.s32 %s26, %s222
          %s224 = smul.addr %s223, 128
          %s225 = scalar_lea.hbm %s1, %s224
          %s226 = sshll.u32 %s218, 4
          %s227 = int_to_ptr.vmem [resolvable:$true] %s226
          %232 = dma.hbm_to_vmem [thread:$0]  %s225, 1024, %s227, %s215, 256, 128, 8
        $region36: #{tpu_custom_call.1} parent=27 // pred_fallthru
          _
      $region28: #{tpu_custom_call.1} parent=5 // pred_fallthru
        _
      %p233 = scmp.le.s32.totalorder 1, %s18
      %p234 = scmp.lt.s32.totalorder %s18, 5
      %p235 = pnand %p233, %p234
      %p236 = pneg %p235
      // Predicated region
      $region37: #{tpu_custom_call.1} parent=5 // pred_check
        _
      $region38: #{tpu_custom_call.1} parent=5 // pred_check_branch
        %238 = sbr.rel (%p235) target = $region40
      $region39: #{tpu_custom_call.1} parent=5 // pred_region
        %s239 = ssub.s32 %s18, 1
        %s240 = sand.u32 %s71, 1
        %s241 = scalar_lea.sflag [#allocation7], %s240
        %s242 = sand.u32 %s71, 1
        %s243 = smul.addr %s242, 64
        %s244 = scalar_lea.vmem [#allocation6], %s243
        // Predicated region
        $region41: #{tpu_custom_call.1} parent=39 // pred_check
          %p245 = pneg %p84
        $region42: #{tpu_custom_call.1} parent=39 // pred_check_branch
          %247 = sbr.rel (%p245) target = $region44
        $region43: #{tpu_custom_call.1} parent=39 // pred_region
          %248 = dma.done %s241, 1024
        $region44: #{tpu_custom_call.1} parent=39 // pred_fallthru
          _
        %p249 = scmp.lt.s32.totalorder %s27, 1
        %s250 = scalar_select %p249, %s27, 1
        %s251 = smul.addr %s250, 16
        %s252 = smul.addr %s251, 4
        %s253 = scalar_lea.vmem %s0, %s252
        %p254 = pneg %p56
        %p255 = pneg %p53
        %s256 = sand.u32 %s71, 1
        %s257 = scalar_lea.sflag [#allocation7], %s256
        %s258 = sand.u32 %s71, 1
        %s259 = smul.addr %s258, 64
        %s260 = scalar_lea.vmem [#allocation6], %s259
        %p261 = pneg %p84
        %p262 = pneg %p81
        %p263 = pneg %p105
        %p264 = pneg %p102
        %p265 = pneg %p126
        %p266 = pneg %p123
        %p267 = pneg %p147
        %p268 = pneg %p144
        %p269 = pneg %p175
        %p270 = pneg %p172
        %s271 = sand.u32 %s162, 1
        %s272 = scalar_lea.sflag [#allocation8], %s271
        %s273 = sand.u32 %s162, 1
        %s274 = smul.addr %s273, 64
        %s275 = scalar_lea.vmem [#allocation9], %s274
        %p276 = scmp.lt.s32.totalorder %s27, 1
        %s277 = scalar_select %p276, %s27, 1
        %s278 = smul.addr %s277, 16
        %s279 = smul.addr %s278, 4
        %s280 = scalar_lea.vmem %s0, %s279
        %p282 = scmp.eq.s32.totalorder %s28, 0
        // Predicated region
        $region45: #{tpu_custom_call.1} parent=39 // pred_check
          %p283 = pneg %p282
        $region46: #{tpu_custom_call.1} parent=39 // pred_check_branch
          %285 = sbr.rel (%p283) target = $region48
        $region47: #{tpu_custom_call.1} parent=39 // pred_region
          %v286 = vld [vmem:[%s2] sm:$0xf]
          %v287 = vld [vmem:[%s2 + $0x4] sm:$0xf]
          %v288 = vld [vmem:[%s2 + $0x8] sm:$0xf]
          %v289 = vld [vmem:[%s2 + $0xc] sm:$0xf]
          %v290 = vld [vmem:[%s2 + $0x10] sm:$0xf]
          %v291 = vld [vmem:[%s2 + $0x14] sm:$0xf]
          %v292 = vld [vmem:[%s2 + $0x18] sm:$0xf]
          %v293 = vld [vmem:[%s2 + $0x1c] sm:$0xf]
          %v294 = vld [vmem:[%s2 + $0x20] sm:$0xf]
          %v295 = vld [vmem:[%s2 + $0x24] sm:$0xf]
          %v296 = vld [vmem:[%s280] sm:$0xff]
          %v297 = vld [vmem:[%s280 + $0x8] sm:$0xff]
          %v298 = vld [vmem:[%s280 + $0x10] sm:$0xff]
          %v299 = vld [vmem:[%s280 + $0x18] sm:$0xff]
          %v300 = vld [vmem:[%s280 + $0x20] sm:$0xff]
          %v301 = vld [vmem:[%s280 + $0x28] sm:$0xff]
          %v302 = vld [vmem:[%s280 + $0x30] sm:$0xff]
          %v303 = vld [vmem:[%s280 + $0x38] sm:$0xff]
          %v304 = vld [vmem:[%s3] sm:$0xff]
          %v305 = vld [vmem:[%s3 + $0x8] sm:$0xff]
          %v306 = vld [vmem:[%s3 + $0x10] sm:$0xff]
          %v307 = vld [vmem:[%s3 + $0x18] sm:$0xff]
          %v308 = vld [vmem:[%s3 + $0x20] sm:$0xff]
          %v309 = vld [vmem:[%s3 + $0x28] sm:$0xff]
          %v310 = vld [vmem:[%s3 + $0x30] sm:$0xff]
          %v311 = vld [vmem:[%s3 + $0x38] sm:$0xff]
          %v312 = vld [vmem:[%s3 + $0x40] sm:$0xff]
          %v313 = vld [vmem:[%s3 + $0x48] sm:$0xff]
          %315 = vset.pattern.permute.xlu0 0
          %316 = vperm.xlu0 %315, %v304
          %v317 = vpop.permute.xlu0 %316
          %320 = vset.pattern.permute.xlu0 0
          %321 = vperm.xlu0 %320, %v305
          %v322 = vpop.permute.xlu0 %321
          %325 = vset.pattern.permute.xlu0 0
          %326 = vperm.xlu0 %325, %v306
          %v327 = vpop.permute.xlu0 %326
          %330 = vset.pattern.permute.xlu0 0
          %331 = vperm.xlu0 %330, %v307
          %v332 = vpop.permute.xlu0 %331
          %335 = vset.pattern.permute.xlu0 0
          %336 = vperm.xlu0 %335, %v308
          %v337 = vpop.permute.xlu0 %336
          %340 = vset.pattern.permute.xlu0 0
          %341 = vperm.xlu0 %340, %v309
          %v342 = vpop.permute.xlu0 %341
          %345 = vset.pattern.permute.xlu0 0
          %346 = vperm.xlu0 %345, %v310
          %v347 = vpop.permute.xlu0 %346
          %350 = vset.pattern.permute.xlu0 0
          %351 = vperm.xlu0 %350, %v311
          %v352 = vpop.permute.xlu0 %351
          %355 = vset.pattern.permute.xlu0 0
          %356 = vperm.xlu0 %355, %v312
          %v357 = vpop.permute.xlu0 %356
          %360 = vset.pattern.permute.xlu0 0
          %361 = vperm.xlu0 %360, %v313
          %v362 = vpop.permute.xlu0 %361
          %v374 = vunpack.c.l.b16 %v286
          %v375 = vunpack.c.l.b16 %v287
          %v376 = vunpack.c.l.b16 %v288
          %v377 = vunpack.c.l.b16 %v289
          %v378 = vunpack.c.l.b16 %v290
          %v379 = vunpack.c.l.b16 %v291
          %v380 = vunpack.c.l.b16 %v292
          %v381 = vunpack.c.l.b16 %v293
          %v382 = vunpack.c.l.b16 %v294
          %v383 = vunpack.c.l.b16 %v295
          %v384 = vpack.c.b16 %v375, %v374
          %v385 = vpack.c.b16 %v377, %v376
          %v386 = vpack.c.b16 %v379, %v378
          %v387 = vpack.c.b16 %v381, %v380
          %v388 = vpack.c.b16 %v383, %v382
          %v397 = vunpack.c.l.b16 %v296
          %v398 = vunpack.c.h.b16 %v296
          %v399 = vunpack.c.l.b16 %v297
          %v400 = vunpack.c.h.b16 %v297
          %v401 = vunpack.c.l.b16 %v298
          %v402 = vunpack.c.h.b16 %v298
          %v403 = vunpack.c.l.b16 %v299
          %v404 = vunpack.c.h.b16 %v299
          %v405 = vunpack.c.l.b16 %v300
          %v406 = vunpack.c.h.b16 %v300
          %v407 = vunpack.c.l.b16 %v301
          %v408 = vunpack.c.h.b16 %v301
          %v409 = vunpack.c.l.b16 %v302
          %v410 = vunpack.c.h.b16 %v302
          %v411 = vunpack.c.l.b16 %v303
          %v412 = vunpack.c.h.b16 %v303
          %v413 = vpack.c.b16 %v399, %v397
          %v414 = vpack.c.b16 %v400, %v398
          %v415 = vpack.c.b16 %v403, %v401
          %v416 = vpack.c.b16 %v404, %v402
          %v417 = vpack.c.b16 %v407, %v405
          %v418 = vpack.c.b16 %v408, %v406
          %v419 = vpack.c.b16 %v411, %v409
          %v420 = vpack.c.b16 %v412, %v410
          %vm429 = vcmask 523264
          %v431 = vsel %vm429, %v384, 0
          %v434 = vsel %vm429, %v385, 0
          %v437 = vsel %vm429, %v386, 0
          %v440 = vsel %vm429, %v387, 0
          %v443 = vsel %vm429, %v388, 0
          %445 = vmatprep.subr.bf16.mxu0 %v414
          %446 = vmatpush1.bf16.msra.mxu0 %v413
          %447 = vmatprep.subr.bf16.mxu0 %v416
          %448 = vmatpush1.bf16.msra.mxu0 %v415
          %449 = vmatprep.subr.bf16.mxu0 %v418
          %450 = vmatpush1.bf16.msra.mxu0 %v417
          %451 = vmatprep.subr.bf16.mxu0 %v420
          %452 = vmatpush1.bf16.msra.mxu0 %v419
          %453 = vmatprep.subr.bf16.mxu0 0
          %454 = vmatpush1.bf16.msra.mxu0 0
          %455 = vmatprep.subr.bf16.mxu0 0
          %456 = vmatpush1.bf16.msra.mxu0 0
          %457 = vmatprep.subr.bf16.mxu0 0
          %458 = vmatpush1.bf16.msra.mxu0 0
          %459 = vmatprep.subr.bf16.mxu0 0
          %460 = vmatpush1.bf16.msra.mxu0 0
          %461 = vmatprep.subr.bf16.mxu0 0
          %462 = vmatpush1.bf16.msra.mxu0 0
          %463 = vmatprep.subr.bf16.mxu0 0
          %464 = vmatpush1.bf16.msra.mxu0 0
          %465 = vmatprep.subr.bf16.mxu0 0
          %466 = vmatpush1.bf16.msra.mxu0 0
          %467 = vmatprep.subr.bf16.mxu0 0
          %468 = vmatpush1.bf16.msra.mxu0 0
          %469 = vmatprep.subr.bf16.mxu0 0
          %470 = vmatpush1.bf16.msra.mxu0 0
          %471 = vmatprep.subr.bf16.mxu0 0
          %472 = vmatpush1.bf16.msra.mxu0 0
          %473 = vmatprep.subr.bf16.mxu0 0
          %474 = vmatpush1.bf16.msra.mxu0 0
          %475 = vmatprep.subr.bf16.mxu0 0
          %476 = vmatpush1.bf16.msra.mxu0 0
          %477 = vmatprep.mubr.bf16.mxu0 0
          %478 = vmatmul.mubr.bf16.gmra.mrb[0].mxu0 %v431
          %v479 = vpop.f32.mrb[0].mxu0
          %v480 = vadd.f32 %v317, %v479
          %v481 = vpop.f32.mrb[0].mxu0
          %v482 = vadd.f32 %v317, %v481
          %v483 = vpop.f32.mrb[0].mxu0
          %v484 = vadd.f32 %v322, %v483
          %v485 = vpop.f32.mrb[0].mxu0
          %v486 = vadd.f32 %v322, %v485
          %487 = vmatprep.mubr.bf16.mxu0 0
          %488 = vmatmul.mubr.bf16.gmra.mrb[0].mxu0 %v434
          %v489 = vpop.f32.mrb[0].mxu0
          %v490 = vadd.f32 %v327, %v489
          %v491 = vpop.f32.mrb[0].mxu0
          %v492 = vadd.f32 %v327, %v491
          %v493 = vpop.f32.mrb[0].mxu0
          %v494 = vadd.f32 %v332, %v493
          %v495 = vpop.f32.mrb[0].mxu0
          %v496 = vadd.f32 %v332, %v495
          %497 = vmatprep.mubr.bf16.mxu0 0
          %498 = vmatmul.mubr.bf16.gmra.mrb[0].mxu0 %v437
          %v499 = vpop.f32.mrb[0].mxu0
          %v500 = vadd.f32 %v337, %v499
          %v501 = vpop.f32.mrb[0].mxu0
          %v502 = vadd.f32 %v337, %v501
          %v503 = vpop.f32.mrb[0].mxu0
          %v504 = vadd.f32 %v342, %v503
          %v505 = vpop.f32.mrb[0].mxu0
          %v506 = vadd.f32 %v342, %v505
          %507 = vmatprep.mubr.bf16.mxu0 0
          %508 = vmatmul.mubr.bf16.gmra.mrb[0].mxu0 %v440
          %v509 = vpop.f32.mrb[0].mxu0
          %v510 = vadd.f32 %v347, %v509
          %v511 = vpop.f32.mrb[0].mxu0
          %v512 = vadd.f32 %v347, %v511
          %v513 = vpop.f32.mrb[0].mxu0
          %v514 = vadd.f32 %v352, %v513
          %v515 = vpop.f32.mrb[0].mxu0
          %v516 = vadd.f32 %v352, %v515
          %517 = vmatprep.mubr.bf16.mxu0 0
          %518 = vmatmul.mubr.bf16.gmra.mrb[0].mxu0 %v443
          %v519 = vpop.f32.mrb[0].mxu0
          %v520 = vadd.f32 %v357, %v519
          %v521 = vpop.f32.mrb[0].mxu0
          %v522 = vadd.f32 %v357, %v521
          %v523 = vpop.f32.mrb[0].mxu0
          %v524 = vadd.f32 %v362, %v523
          %v525 = vpop.f32.mrb[0].mxu0
          %v526 = vadd.f32 %v362, %v525
          %527 = vdwg.mxu0
          %v528 = vpack.c.bf16 %v484, %v480
          %v529 = vpack.c.bf16 %v486, %v482
          %v530 = vpack.c.bf16 %v494, %v490
          %v531 = vpack.c.bf16 %v496, %v492
          %v532 = vpack.c.bf16 %v504, %v500
          %v533 = vpack.c.bf16 %v506, %v502
          %v534 = vpack.c.bf16 %v514, %v510
          %v535 = vpack.c.bf16 %v516, %v512
          %536 = vst [vmem:[#allocation4] sm:$0xff] %v528
          %537 = vst [vmem:[#allocation4 + $0x8] sm:$0xff] %v529
          %538 = vst [vmem:[#allocation4 + $0x10] sm:$0xff] %v530
          %539 = vst [vmem:[#allocation4 + $0x18] sm:$0xff] %v531
          %540 = vst [vmem:[#allocation4 + $0x20] sm:$0xff] %v532
          %541 = vst [vmem:[#allocation4 + $0x28] sm:$0xff] %v533
          %542 = vst [vmem:[#allocation4 + $0x30] sm:$0xff] %v534
          %543 = vst [vmem:[#allocation4 + $0x38] sm:$0xff] %v535
          %v544 = vpack.c.bf16 %v524, %v524
          %v545 = vpack.c.bf16 %v526, %v526
          %v548 = vunpack.c.l.b16 %v544
          %v549 = vunpack.c.l.b16 %v545
          %v550 = vpack.c.b16 %v549, %v548
          %552 = vst [vmem:[#allocation2] sm:$0xff] %v550
          %553 = vxpose.xlu0.b32.start [1/16] %v520, 128
          %554 = vxpose.xlu0.b32.cont [2/16] 0.0, 128
          %555 = vxpose.xlu0.b32.cont [3/16] 0.0, 128
          %556 = vxpose.xlu0.b32.cont [4/16] 0.0, 128
          %557 = vxpose.xlu0.b32.cont [5/16] 0.0, 128
          %558 = vxpose.xlu0.b32.cont [6/16] 0.0, 128
          %559 = vxpose.xlu0.b32.cont [7/16] 0.0, 128
          %560 = vxpose.xlu0.b32.cont [8/16] 0.0, 128
          %561 = vxpose.xlu0.b32.cont [9/16] 0.0, 128
          %562 = vxpose.xlu0.b32.cont [10/16] 0.0, 128
          %563 = vxpose.xlu0.b32.cont [11/16] 0.0, 128
          %564 = vxpose.xlu0.b32.cont [12/16] 0.0, 128
          %565 = vxpose.xlu0.b32.cont [13/16] 0.0, 128
          %566 = vxpose.xlu0.b32.cont [14/16] 0.0, 128
          %567 = vxpose.xlu0.b32.cont [15/16] 0.0, 128
          %568 = vxpose.xlu0.b32.end [16/16] 0.0, 128
          %v569 = vpop.trf.xlu0
          %v570 = vpop.trf.xlu0
          %v571 = vpop.trf.xlu0
          %v572 = vpop.trf.xlu0
          %v573 = vpop.trf.xlu0
          %v574 = vpop.trf.xlu0
          %v575 = vpop.trf.xlu0
          %v576 = vpop.trf.xlu0
          %v577 = vpop.trf.xlu0
          %v578 = vpop.trf.xlu0
          %v579 = vpop.trf.xlu0
          %v580 = vpop.trf.xlu0
          %v581 = vpop.trf.xlu0
          %v582 = vpop.trf.xlu0
          %v583 = vpop.trf.xlu0
          %v584 = vpop.trf.xlu0
          %585 = vxpose.xlu0.b32.start [1/16] %v522, 128
          %586 = vxpose.xlu0.b32.cont [2/16] 0.0, 128
          %587 = vxpose.xlu0.b32.cont [3/16] 0.0, 128
          %588 = vxpose.xlu0.b32.cont [4/16] 0.0, 128
          %589 = vxpose.xlu0.b32.cont [5/16] 0.0, 128
          %590 = vxpose.xlu0.b32.cont [6/16] 0.0, 128
          %591 = vxpose.xlu0.b32.cont [7/16] 0.0, 128
          %592 = vxpose.xlu0.b32.cont [8/16] 0.0, 128
          %593 = vxpose.xlu0.b32.cont [9/16] 0.0, 128
          %594 = vxpose.xlu0.b32.cont [10/16] 0.0, 128
          %595 = vxpose.xlu0.b32.cont [11/16] 0.0, 128
          %596 = vxpose.xlu0.b32.cont [12/16] 0.0, 128
          %597 = vxpose.xlu0.b32.cont [13/16] 0.0, 128
          %598 = vxpose.xlu0.b32.cont [14/16] 0.0, 128
          %599 = vxpose.xlu0.b32.cont [15/16] 0.0, 128
          %600 = vxpose.xlu0.b32.end [16/16] 0.0, 128
          %v601 = vpop.trf.xlu0
          %v602 = vpop.trf.xlu0
          %v603 = vpop.trf.xlu0
          %v604 = vpop.trf.xlu0
          %v605 = vpop.trf.xlu0
          %v606 = vpop.trf.xlu0
          %v607 = vpop.trf.xlu0
          %v608 = vpop.trf.xlu0
          %v609 = vpop.trf.xlu0
          %v610 = vpop.trf.xlu0
          %v611 = vpop.trf.xlu0
          %v612 = vpop.trf.xlu0
          %v613 = vpop.trf.xlu0
          %v614 = vpop.trf.xlu0
          %v615 = vpop.trf.xlu0
          %v616 = vpop.trf.xlu0
          %v617 = vpack.c.bf16 %v570, %v569
          %v618 = vpack.c.bf16 %v572, %v571
          %v619 = vpack.c.bf16 %v574, %v573
          %v620 = vpack.c.bf16 %v576, %v575
          %v621 = vpack.c.bf16 %v578, %v577
          %v622 = vpack.c.bf16 %v580, %v579
          %v623 = vpack.c.bf16 %v582, %v581
          %v624 = vpack.c.bf16 %v584, %v583
          %v625 = vpack.c.bf16 %v602, %v601
          %v626 = vpack.c.bf16 %v604, %v603
          %v627 = vpack.c.bf16 %v606, %v605
          %v628 = vpack.c.bf16 %v608, %v607
          %v629 = vpack.c.bf16 %v610, %v609
          %v630 = vpack.c.bf16 %v612, %v611
          %v631 = vpack.c.bf16 %v614, %v613
          %v632 = vpack.c.bf16 %v616, %v615
          %vm633 = vcmask 64512
          %634 = vst.msk [vmem:[#allocation3] sm:$0xff] %vm633, %v617
          %635 = vst.msk [vmem:[#allocation3 + $0x8] sm:$0xff] %vm633, %v618
          %636 = vst.msk [vmem:[#allocation3 + $0x10] sm:$0xff] %vm633, %v619
          %637 = vst.msk [vmem:[#allocation3 + $0x18] sm:$0xff] %vm633, %v620
          %638 = vst.msk [vmem:[#allocation3 + $0x20] sm:$0xff] %vm633, %v621
          %639 = vst.msk [vmem:[#allocation3 + $0x28] sm:$0xff] %vm633, %v622
          %640 = vst.msk [vmem:[#allocation3 + $0x30] sm:$0xff] %vm633, %v623
          %641 = vst.msk [vmem:[#allocation3 + $0x38] sm:$0xff] %vm633, %v624
          %642 = vst.msk [vmem:[#allocation3 + $0x40] sm:$0xff] %vm633, %v625
          %643 = vst.msk [vmem:[#allocation3 + $0x48] sm:$0xff] %vm633, %v626
          %644 = vst.msk [vmem:[#allocation3 + $0x50] sm:$0xff] %vm633, %v627
          %645 = vst.msk [vmem:[#allocation3 + $0x58] sm:$0xff] %vm633, %v628
          %646 = vst.msk [vmem:[#allocation3 + $0x60] sm:$0xff] %vm633, %v629
          %647 = vst.msk [vmem:[#allocation3 + $0x68] sm:$0xff] %vm633, %v630
          %648 = vst.msk [vmem:[#allocation3 + $0x70] sm:$0xff] %vm633, %v631
          %649 = vst.msk [vmem:[#allocation3 + $0x78] sm:$0xff] %vm633, %v632
        $region48: #{tpu_custom_call.1} parent=39 // pred_fallthru
          _
        %s650 = smul.u32 %s28, 128
        %s651 = sshra.s32 %s650, 7
        %s652 = sand.u32 %s650, 127
        %s653 = smul.addr %s651, 4
        %s654 = scalar_lea.vmem [#allocation2], %s653
        %v655 = vld [vmem:[%s654] sm:$0xf]
        %v656 = vld [vmem:[#allocation3] sm:$0xff]
        %v657 = vld [vmem:[#allocation3 + $0x8] sm:$0xff]
        %v658 = vld [vmem:[#allocation3 + $0x10] sm:$0xff]
        %v659 = vld [vmem:[#allocation3 + $0x18] sm:$0xff]
        %v660 = vld [vmem:[#allocation3 + $0x20] sm:$0xff]
        %v661 = vld [vmem:[#allocation3 + $0x28] sm:$0xff]
        %v662 = vld [vmem:[#allocation3 + $0x30] sm:$0xff]
        %v663 = vld [vmem:[#allocation3 + $0x38] sm:$0xff]
        %v664 = vld [vmem:[#allocation3 + $0x40] sm:$0xff]
        %v665 = vld [vmem:[#allocation3 + $0x48] sm:$0xff]
        %v666 = vld [vmem:[#allocation3 + $0x50] sm:$0xff]
        %v667 = vld [vmem:[#allocation3 + $0x58] sm:$0xff]
        %v668 = vld [vmem:[#allocation3 + $0x60] sm:$0xff]
        %v669 = vld [vmem:[#allocation3 + $0x68] sm:$0xff]
        %v670 = vld [vmem:[#allocation3 + $0x70] sm:$0xff]
        %v671 = vld [vmem:[#allocation3 + $0x78] sm:$0xff]
        %vm672 = vcmask 64512
        %v674 = vsel %vm672, %v656, 0
        %v677 = vsel %vm672, %v657, 0
        %v680 = vsel %vm672, %v658, 0
        %v683 = vsel %vm672, %v659, 0
        %v686 = vsel %vm672, %v660, 0
        %v689 = vsel %vm672, %v661, 0
        %v692 = vsel %vm672, %v662, 0
        %v695 = vsel %vm672, %v663, 0
        %v698 = vsel %vm672, %v664, 0
        %v701 = vsel %vm672, %v665, 0
        %v704 = vsel %vm672, %v666, 0
        %v707 = vsel %vm672, %v667, 0
        %v710 = vsel %vm672, %v668, 0
        %v713 = vsel %vm672, %v669, 0
        %v716 = vsel %vm672, %v670, 0
        %v719 = vsel %vm672, %v671, 0
        %vm721 = vcmask 1043456
        %v723 = vsel %vm721, %v655, 0
        %725 = vmatprep.subr.bf16.mxu0 0
        %726 = vmatpush1.bf16.msra.mxu0 %v723
        %727 = vmatprep.subr.bf16.mxu0 0
        %728 = vmatpush1.bf16.msra.mxu0 0
        %729 = vmatprep.subr.bf16.mxu0 0
        %730 = vmatpush1.bf16.msra.mxu0 0
        %731 = vmatprep.subr.bf16.mxu0 0
        %732 = vmatpush1.bf16.msra.mxu0 0
        %733 = vmatprep.subr.bf16.mxu0 0
        %734 = vmatpush1.bf16.msra.mxu0 0
        %735 = vmatprep.subr.bf16.mxu0 0
        %736 = vmatpush1.bf16.msra.mxu0 0
        %737 = vmatprep.subr.bf16.mxu0 0
        %738 = vmatpush1.bf16.msra.mxu0 0
        %739 = vmatprep.subr.bf16.mxu0 0
        %740 = vmatpush1.bf16.msra.mxu0 0
        %741 = vmatprep.subr.bf16.mxu0 0
        %742 = vmatpush1.bf16.msra.mxu0 0
        %743 = vmatprep.subr.bf16.mxu0 0
        %744 = vmatpush1.bf16.msra.mxu0 0
        %745 = vmatprep.subr.bf16.mxu0 0
        %746 = vmatpush1.bf16.msra.mxu0 0
        %747 = vmatprep.subr.bf16.mxu0 0
        %748 = vmatpush1.bf16.msra.mxu0 0
        %749 = vmatprep.subr.bf16.mxu0 0
        %750 = vmatpush1.bf16.msra.mxu0 0
        %751 = vmatprep.subr.bf16.mxu0 0
        %752 = vmatpush1.bf16.msra.mxu0 0
        %753 = vmatprep.subr.bf16.mxu0 0
        %754 = vmatpush1.bf16.msra.mxu0 0
        %755 = vmatprep.subr.bf16.mxu0 0
        %756 = vmatpush1.bf16.msra.mxu0 0
        %757 = vmatprep.mubr.bf16.mxu0 0
        %758 = vmatmul.mubr.bf16.gmra.mrb[0].mxu0 %v674
        %v759 = vpop.f32.mrb[0].mxu0
        %v760 = vadd.f32 0.0, %v759
        %v761 = vpop.f32.mrb[0].mxu0
        %v762 = vpop.f32.mrb[0].mxu0
        %v763 = vadd.f32 0.0, %v762
        %v764 = vpop.f32.mrb[0].mxu0
        %765 = vmatprep.mubr.bf16.mxu0 0
        %766 = vmatmul.mubr.bf16.gmra.mrb[0].mxu0 %v677
        %v767 = vpop.f32.mrb[0].mxu0
        %v768 = vadd.f32 0.0, %v767
        %v769 = vpop.f32.mrb[0].mxu0
        %v770 = vpop.f32.mrb[0].mxu0
        %v771 = vadd.f32 0.0, %v770
        %v772 = vpop.f32.mrb[0].mxu0
        %773 = vmatprep.mubr.bf16.mxu0 0
        %774 = vmatmul.mubr.bf16.gmra.mrb[0].mxu0 %v680
        %v775 = vpop.f32.mrb[0].mxu0
        %v776 = vadd.f32 0.0, %v775
        %v777 = vpop.f32.mrb[0].mxu0
        %v778 = vpop.f32.mrb[0].mxu0
        %v779 = vadd.f32 0.0, %v778
        %v780 = vpop.f32.mrb[0].mxu0
        %781 = vmatprep.mubr.bf16.mxu0 0
        %782 = vmatmul.mubr.bf16.gmra.mrb[0].mxu0 %v683
        %v783 = vpop.f32.mrb[0].mxu0
        %v784 = vadd.f32 0.0, %v783
        %v785 = vpop.f32.mrb[0].mxu0
        %v786 = vpop.f32.mrb[0].mxu0
        %v787 = vadd.f32 0.0, %v786
        %v788 = vpop.f32.mrb[0].mxu0
        %789 = vmatprep.mubr.bf16.mxu0 0
        %790 = vmatmul.mubr.bf16.gmra.mrb[0].mxu0 %v686
        %v791 = vpop.f32.mrb[0].mxu0
        %v792 = vadd.f32 0.0, %v791
        %v793 = vpop.f32.mrb[0].mxu0
        %v794 = vpop.f32.mrb[0].mxu0
        %v795 = vadd.f32 0.0, %v794
        %v796 = vpop.f32.mrb[0].mxu0
        %797 = vmatprep.mubr.bf16.mxu0 0
        %798 = vmatmul.mubr.bf16.gmra.mrb[0].mxu0 %v689
        %v799 = vpop.f32.mrb[0].mxu0
        %v800 = vadd.f32 0.0, %v799
        %v801 = vpop.f32.mrb[0].mxu0
        %v802 = vpop.f32.mrb[0].mxu0
        %v803 = vadd.f32 0.0, %v802
        %v804 = vpop.f32.mrb[0].mxu0
        %805 = vmatprep.mubr.bf16.mxu0 0
        %806 = vmatmul.mubr.bf16.gmra.mrb[0].mxu0 %v692
        %v807 = vpop.f32.mrb[0].mxu0
        %v808 = vadd.f32 0.0, %v807
        %v809 = vpop.f32.mrb[0].mxu0
        %v810 = vpop.f32.mrb[0].mxu0
        %v811 = vadd.f32 0.0, %v810
        %v812 = vpop.f32.mrb[0].mxu0
        %813 = vmatprep.mubr.bf16.mxu0 0
        %814 = vmatmul.mubr.bf16.gmra.mrb[0].mxu0 %v695
        %v815 = vpop.f32.mrb[0].mxu0
        %v816 = vadd.f32 0.0, %v815
        %v817 = vpop.f32.mrb[0].mxu0
        %v818 = vpop.f32.mrb[0].mxu0
        %v819 = vadd.f32 0.0, %v818
        %v820 = vpop.f32.mrb[0].mxu0
        %821 = vmatprep.mubr.bf16.mxu0 0
        %822 = vmatmul.mubr.bf16.gmra.mrb[0].mxu0 %v698
        %v823 = vpop.f32.mrb[0].mxu0
        %v824 = vadd.f32 0.0, %v823
        %v825 = vpop.f32.mrb[0].mxu0
        %v826 = vpop.f32.mrb[0].mxu0
        %v827 = vadd.f32 0.0, %v826
        %v828 = vpop.f32.mrb[0].mxu0
        %829 = vmatprep.mubr.bf16.mxu0 0
        %830 = vmatmul.mubr.bf16.gmra.mrb[0].mxu0 %v701
        %v831 = vpop.f32.mrb[0].mxu0
        %v832 = vadd.f32 0.0, %v831
        %v833 = vpop.f32.mrb[0].mxu0
        %v834 = vpop.f32.mrb[0].mxu0
        %v835 = vadd.f32 0.0, %v834
        %v836 = vpop.f32.mrb[0].mxu0
        %837 = vmatprep.mubr.bf16.mxu0 0
        %838 = vmatmul.mubr.bf16.gmra.mrb[0].mxu0 %v704
        %v839 = vpop.f32.mrb[0].mxu0
        %v840 = vadd.f32 0.0, %v839
        %v841 = vpop.f32.mrb[0].mxu0
        %v842 = vpop.f32.mrb[0].mxu0
        %v843 = vadd.f32 0.0, %v842
        %v844 = vpop.f32.mrb[0].mxu0
        %845 = vmatprep.mubr.bf16.mxu0 0
        %846 = vmatmul.mubr.bf16.gmra.mrb[0].mxu0 %v707
        %v847 = vpop.f32.mrb[0].mxu0
        %v848 = vadd.f32 0.0, %v847
        %v849 = vpop.f32.mrb[0].mxu0
        %v850 = vpop.f32.mrb[0].mxu0
        %v851 = vadd.f32 0.0, %v850
        %v852 = vpop.f32.mrb[0].mxu0
        %853 = vmatprep.mubr.bf16.mxu0 0
        %854 = vmatmul.mubr.bf16.gmra.mrb[0].mxu0 %v710
        %v855 = vpop.f32.mrb[0].mxu0
        %v856 = vadd.f32 0.0, %v855
        %v857 = vpop.f32.mrb[0].mxu0
        %v858 = vpop.f32.mrb[0].mxu0
        %v859 = vadd.f32 0.0, %v858
        %v860 = vpop.f32.mrb[0].mxu0
        %861 = vmatprep.mubr.bf16.mxu0 0
        %862 = vmatmul.mubr.bf16.gmra.mrb[0].mxu0 %v713
        %v863 = vpop.f32.mrb[0].mxu0
        %v864 = vadd.f32 0.0, %v863
        %v865 = vpop.f32.mrb[0].mxu0
        %v866 = vpop.f32.mrb[0].mxu0
        %v867 = vadd.f32 0.0, %v866
        %v868 = vpop.f32.mrb[0].mxu0
        %869 = vmatprep.mubr.bf16.mxu0 0
        %870 = vmatmul.mubr.bf16.gmra.mrb[0].mxu0 %v716
        %v871 = vpop.f32.mrb[0].mxu0
        %v872 = vadd.f32 0.0, %v871
        %v873 = vpop.f32.mrb[0].mxu0
        %v874 = vpop.f32.mrb[0].mxu0
        %v875 = vadd.f32 0.0, %v874
        %v876 = vpop.f32.mrb[0].mxu0
        %877 = vmatprep.mubr.bf16.mxu0 0
        %878 = vmatmul.mubr.bf16.gmra.mrb[0].mxu0 %v719
        %v879 = vpop.f32.mrb[0].mxu0
        %v880 = vadd.f32 0.0, %v879
        %v881 = vpop.f32.mrb[0].mxu0
        %v882 = vpop.f32.mrb[0].mxu0
        %v883 = vadd.f32 0.0, %v882
        %v884 = vpop.f32.mrb[0].mxu0
        %885 = vdwg.mxu0
        %v886 = vmax.f32 %v760, %v776
        %v887 = vmax.f32 %v763, %v779
        %v888 = vmax.f32 %v768, %v784
        %v889 = vmax.f32 %v771, %v787
        %v890 = vmax.f32 %v886, %v792
        %v891 = vmax.f32 %v887, %v795
        %v892 = vmax.f32 %v888, %v800
        %v893 = vmax.f32 %v889, %v803
        %v894 = vmax.f32 %v890, %v808
        %v895 = vmax.f32 %v891, %v811
        %v896 = vmax.f32 %v892, %v816
        %v897 = vmax.f32 %v893, %v819
        %v898 = vmax.f32 %v894, %v824
        %v899 = vmax.f32 %v895, %v827
        %v900 = vmax.f32 %v896, %v832
        %v901 = vmax.f32 %v897, %v835
        %v902 = vmax.f32 %v898, %v840
        %v903 = vmax.f32 %v899, %v843
        %v904 = vmax.f32 %v900, %v848
        %v905 = vmax.f32 %v901, %v851
        %v906 = vmax.f32 %v902, %v856
        %v907 = vmax.f32 %v903, %v859
        %v908 = vmax.f32 %v904, %v864
        %v909 = vmax.f32 %v905, %v867
        %v910 = vmax.f32 %v906, %v872
        %v911 = vmax.f32 %v907, %v875
        %v912 = vmax.f32 %v908, %v880
        %v913 = vmax.f32 %v909, %v883
        %v914 = vmax.f32 %v910, %v911
        %v915 = vmax.f32 %v912, %v913
        %v916 = vmax.f32 %v914, %v915
        %v917 = vrot.slane %v916, 4
        %v918 = vmax.f32 %v916, %v917
        %v919 = vrot.slane %v918, 2
        %v920 = vmax.f32 %v918, %v919
        %v921 = vrot.slane %v920, 1
        %v922 = vmax.f32 %v920, %v921
        %v923 = vsub.f32 %v760, %v922
        %v924 = vsub.f32 %v763, %v922
        %v925 = vsub.f32 %v768, %v922
        %v926 = vsub.f32 %v771, %v922
        %v927 = vsub.f32 %v776, %v922
        %v928 = vsub.f32 %v779, %v922
        %v929 = vsub.f32 %v784, %v922
        %v930 = vsub.f32 %v787, %v922
        %v931 = vsub.f32 %v792, %v922
        %v932 = vsub.f32 %v795, %v922
        %v933 = vsub.f32 %v800, %v922
        %v934 = vsub.f32 %v803, %v922
        %v935 = vsub.f32 %v808, %v922
        %v936 = vsub.f32 %v811, %v922
        %v937 = vsub.f32 %v816, %v922
        %v938 = vsub.f32 %v819, %v922
        %v939 = vsub.f32 %v824, %v922
        %v940 = vsub.f32 %v827, %v922
        %v941 = vsub.f32 %v832, %v922
        %v942 = vsub.f32 %v835, %v922
        %v943 = vsub.f32 %v840, %v922
        %v944 = vsub.f32 %v843, %v922
        %v945 = vsub.f32 %v848, %v922
        %v946 = vsub.f32 %v851, %v922
        %v947 = vsub.f32 %v856, %v922
        %v948 = vsub.f32 %v859, %v922
        %v949 = vsub.f32 %v864, %v922
        %v950 = vsub.f32 %v867, %v922
        %v951 = vsub.f32 %v872, %v922
        %v952 = vsub.f32 %v875, %v922
        %v953 = vsub.f32 %v880, %v922
        %v954 = vsub.f32 %v883, %v922
        %v955 = vmul.f32 %v923, 1.442695
        %v956 = vpow.pop %v955
        %v957 = vmul.f32 %v924, 1.442695
        %v958 = vpow.pop %v957
        %v959 = vmul.f32 %v925, 1.442695
        %v960 = vpow.pop %v959
        %v961 = vmul.f32 %v926, 1.442695
        %v962 = vpow.pop %v961
        %v963 = vmul.f32 %v927, 1.442695
        %v964 = vpow.pop %v963
        %v965 = vmul.f32 %v928, 1.442695
        %v966 = vpow.pop %v965
        %v967 = vmul.f32 %v929, 1.442695
        %v968 = vpow.pop %v967
        %v969 = vmul.f32 %v930, 1.442695
        %v970 = vpow.pop %v969
        %v971 = vmul.f32 %v931, 1.442695
        %v972 = vpow.pop %v971
        %v973 = vmul.f32 %v932, 1.442695
        %v974 = vpow.pop %v973
        %v975 = vmul.f32 %v933, 1.442695
        %v976 = vpow.pop %v975
        %v977 = vmul.f32 %v934, 1.442695
        %v978 = vpow.pop %v977
        %v979 = vmul.f32 %v935, 1.442695
        %v980 = vpow.pop %v979
        %v981 = vmul.f32 %v936, 1.442695
        %v982 = vpow.pop %v981
        %v983 = vmul.f32 %v937, 1.442695
        %v984 = vpow.pop %v983
        %v985 = vmul.f32 %v938, 1.442695
        %v986 = vpow.pop %v985
        %v987 = vmul.f32 %v939, 1.442695
        %v988 = vpow.pop %v987
        %v989 = vmul.f32 %v940, 1.442695
        %v990 = vpow.pop %v989
        %v991 = vmul.f32 %v941, 1.442695
        %v992 = vpow.pop %v991
        %v993 = vmul.f32 %v942, 1.442695
        %v994 = vpow.pop %v993
        %v995 = vmul.f32 %v943, 1.442695
        %v996 = vpow.pop %v995
        %v997 = vmul.f32 %v944, 1.442695
        %v998 = vpow.pop %v997
        %v999 = vmul.f32 %v945, 1.442695
        %v1000 = vpow.pop %v999
        %v1001 = vmul.f32 %v946, 1.442695
        %v1002 = vpow.pop %v1001
        %v1003 = vmul.f32 %v947, 1.442695
        %v1004 = vpow.pop %v1003
        %v1005 = vmul.f32 %v948, 1.442695
        %v1006 = vpow.pop %v1005
        %v1007 = vmul.f32 %v949, 1.442695
        %v1008 = vpow.pop %v1007
        %v1009 = vmul.f32 %v950, 1.442695
        %v1010 = vpow.pop %v1009
        %v1011 = vmul.f32 %v951, 1.442695
        %v1012 = vpow.pop %v1011
        %v1013 = vmul.f32 %v952, 1.442695
        %v1014 = vpow.pop %v1013
        %v1015 = vmul.f32 %v953, 1.442695
        %v1016 = vpow.pop %v1015
        %v1017 = vmul.f32 %v954, 1.442695
        %v1018 = vpow.pop %v1017
        %v1019 = vadd.f32 %v956, %v958
        %v1020 = vadd.f32 %v1019, %v960
        %v1021 = vadd.f32 %v1020, %v962
        %v1022 = vadd.f32 %v1021, %v964
        %v1023 = vadd.f32 %v1022, %v966
        %v1024 = vadd.f32 %v1023, %v968
        %v1025 = vadd.f32 %v1024, %v970
        %v1026 = vadd.f32 %v1025, %v972
        %v1027 = vadd.f32 %v1026, %v974
        %v1028 = vadd.f32 %v1027, %v976
        %v1029 = vadd.f32 %v1028, %v978
        %v1030 = vadd.f32 %v1029, %v980
        %v1031 = vadd.f32 %v1030, %v982
        %v1032 = vadd.f32 %v1031, %v984
        %v1033 = vadd.f32 %v1032, %v986
        %v1034 = vadd.f32 %v1033, %v988
        %v1035 = vadd.f32 %v1034, %v990
        %v1036 = vadd.f32 %v1035, %v992
        %v1037 = vadd.f32 %v1036, %v994
        %v1038 = vadd.f32 %v1037, %v996
        %v1039 = vadd.f32 %v1038, %v998
        %v1040 = vadd.f32 %v1039, %v1000
        %v1041 = vadd.f32 %v1040, %v1002
        %v1042 = vadd.f32 %v1041, %v1004
        %v1043 = vadd.f32 %v1042, %v1006
        %v1044 = vadd.f32 %v1043, %v1008
        %v1045 = vadd.f32 %v1044, %v1010
        %v1046 = vadd.f32 %v1045, %v1012
        %v1047 = vadd.f32 %v1046, %v1014
        %v1048 = vadd.f32 %v1047, %v1016
        %v1049 = vadd.f32 %v1048, %v1018
        %v1050 = vrot.slane %v1049, 4
        %v1051 = vadd.f32 %v1049, %v1050
        %v1052 = vrot.slane %v1051, 2
        %v1053 = vadd.f32 %v1051, %v1052
        %v1054 = vrot.slane %v1053, 1
        %v1055 = vadd.f32 %v1053, %v1054
        %v1056 = vpack.c.bf16 %v958, %v956
        %v1057 = vpack.c.bf16 %v962, %v960
        %v1058 = vpack.c.bf16 %v966, %v964
        %v1059 = vpack.c.bf16 %v970, %v968
        %v1060 = vpack.c.bf16 %v974, %v972
        %v1061 = vpack.c.bf16 %v978, %v976
        %v1062 = vpack.c.bf16 %v982, %v980
        %v1063 = vpack.c.bf16 %v986, %v984
        %v1064 = vpack.c.bf16 %v990, %v988
        %v1065 = vpack.c.bf16 %v994, %v992
        %v1066 = vpack.c.bf16 %v998, %v996
        %v1067 = vpack.c.bf16 %v1002, %v1000
        %v1068 = vpack.c.bf16 %v1006, %v1004
        %v1069 = vpack.c.bf16 %v1010, %v1008
        %v1070 = vpack.c.bf16 %v1014, %v1012
        %v1071 = vpack.c.bf16 %v1018, %v1016
        %v1072 = vld [vmem:[#allocation4] sm:$0xff]
        %v1073 = vld [vmem:[#allocation4 + $0x8] sm:$0xff]
        %v1074 = vld [vmem:[#allocation4 + $0x10] sm:$0xff]
        %v1075 = vld [vmem:[#allocation4 + $0x18] sm:$0xff]
        %v1076 = vld [vmem:[#allocation4 + $0x20] sm:$0xff]
        %v1077 = vld [vmem:[#allocation4 + $0x28] sm:$0xff]
        %v1078 = vld [vmem:[#allocation4 + $0x30] sm:$0xff]
        %v1079 = vld [vmem:[#allocation4 + $0x38] sm:$0xff]
        %1080 = vmatprep.subr.bf16.mxu0 0
        %1081 = vmatpush1.bf16.msra.mxu0 %v1056
        %1082 = vmatprep.subr.bf16.mxu0 0
        %1083 = vmatpush1.bf16.msra.mxu0 %v1057
        %1084 = vmatprep.subr.bf16.mxu0 0
        %1085 = vmatpush1.bf16.msra.mxu0 %v1058
        %1086 = vmatprep.subr.bf16.mxu0 0
        %1087 = vmatpush1.bf16.msra.mxu0 %v1059
        %1088 = vmatprep.subr.bf16.mxu0 0
        %1089 = vmatpush1.bf16.msra.mxu0 %v1060
        %1090 = vmatprep.subr.bf16.mxu0 0
        %1091 = vmatpush1.bf16.msra.mxu0 %v1061
        %1092 = vmatprep.subr.bf16.mxu0 0
        %1093 = vmatpush1.bf16.msra.mxu0 %v1062
        %1094 = vmatprep.subr.bf16.mxu0 0
        %1095 = vmatpush1.bf16.msra.mxu0 %v1063
        %1096 = vmatprep.subr.bf16.mxu0 0
        %1097 = vmatpush1.bf16.msra.mxu0 %v1064
        %1098 = vmatprep.subr.bf16.mxu0 0
        %1099 = vmatpush1.bf16.msra.mxu0 %v1065
        %1100 = vmatprep.subr.bf16.mxu0 0
        %1101 = vmatpush1.bf16.msra.mxu0 %v1066
        %1102 = vmatprep.subr.bf16.mxu0 0
        %1103 = vmatpush1.bf16.msra.mxu0 %v1067
        %1104 = vmatprep.subr.bf16.mxu0 0
        %1105 = vmatpush1.bf16.msra.mxu0 %v1068
        %1106 = vmatprep.subr.bf16.mxu0 0
        %1107 = vmatpush1.bf16.msra.mxu0 %v1069
        %1108 = vmatprep.subr.bf16.mxu0 0
        %1109 = vmatpush1.bf16.msra.mxu0 %v1070
        %1110 = vmatprep.subr.bf16.mxu0 0
        %1111 = vmatpush1.bf16.msra.mxu0 %v1071
        %1112 = vmatprep.mubr.bf16.mxu0 %v1073
        %1113 = vmatmul.mubr.bf16.gmra.mrb[0].mxu0 %v1072
        %v1114 = vpop.f32.mrb[0].mxu0
        %v1115 = vadd.f32 0.0, %v1114
        %v1116 = vpop.f32.mrb[0].mxu0
        %v1117 = vpop.f32.mrb[0].mxu0
        %v1118 = vadd.f32 0.0, %v1117
        %v1119 = vpop.f32.mrb[0].mxu0
        %1120 = vmatprep.mubr.bf16.mxu0 %v1075
        %1121 = vmatmul.mubr.bf16.gmra.mrb[0].mxu0 %v1074
        %v1122 = vpop.f32.mrb[0].mxu0
        %v1123 = vadd.f32 0.0, %v1122
        %v1124 = vpop.f32.mrb[0].mxu0
        %v1125 = vpop.f32.mrb[0].mxu0
        %v1126 = vadd.f32 0.0, %v1125
        %v1127 = vpop.f32.mrb[0].mxu0
        %1128 = vmatprep.mubr.bf16.mxu0 %v1077
        %1129 = vmatmul.mubr.bf16.gmra.mrb[0].mxu0 %v1076
        %v1130 = vpop.f32.mrb[0].mxu0
        %v1131 = vadd.f32 0.0, %v1130
        %v1132 = vpop.f32.mrb[0].mxu0
        %v1133 = vpop.f32.mrb[0].mxu0
        %v1134 = vadd.f32 0.0, %v1133
        %v1135 = vpop.f32.mrb[0].mxu0
        %1136 = vmatprep.mubr.bf16.mxu0 %v1079
        %1137 = vmatmul.mubr.bf16.gmra.mrb[0].mxu0 %v1078
        %v1138 = vpop.f32.mrb[0].mxu0
        %v1139 = vadd.f32 0.0, %v1138
        %v1140 = vpop.f32.mrb[0].mxu0
        %v1141 = vpop.f32.mrb[0].mxu0
        %v1142 = vadd.f32 0.0, %v1141
        %v1143 = vpop.f32.mrb[0].mxu0
        %1144 = vdwg.mxu0
        %s1145 = sld [smem:[#allocation5]]
        %v1146 = vrcp.pop %v1055
        %v1147 = vstv %s1145
        %v1148 = vmul.f32 %v1147, %v1146
        %v1149 = vmul.f32 %v1115, %v1148
        %v1150 = vmul.f32 %v1118, %v1148
        %v1151 = vmul.f32 %v1123, %v1148
        %v1152 = vmul.f32 %v1126, %v1148
        %v1153 = vmul.f32 %v1131, %v1148
        %v1154 = vmul.f32 %v1134, %v1148
        %v1155 = vmul.f32 %v1139, %v1148
        %v1156 = vmul.f32 %v1142, %v1148
        %v1157 = vld [vmem:[%s244] sm:$0xff]
        %v1158 = vld [vmem:[%s244 + $0x8] sm:$0xff]
        %v1159 = vld [vmem:[%s244 + $0x10] sm:$0xff]
        %v1160 = vld [vmem:[%s244 + $0x18] sm:$0xff]
        %v1161 = vld [vmem:[%s244 + $0x20] sm:$0xff]
        %v1162 = vld [vmem:[%s244 + $0x28] sm:$0xff]
        %v1163 = vld [vmem:[%s244 + $0x30] sm:$0xff]
        %v1164 = vld [vmem:[%s244 + $0x38] sm:$0xff]
        %v1165 = vadd.f32 %v1149, %v1157
        %v1166 = vadd.f32 %v1150, %v1158
        %v1167 = vadd.f32 %v1151, %v1159
        %v1168 = vadd.f32 %v1152, %v1160
        %v1169 = vadd.f32 %v1153, %v1161
        %v1170 = vadd.f32 %v1154, %v1162
        %v1171 = vadd.f32 %v1155, %v1163
        %v1172 = vadd.f32 %v1156, %v1164
        %1173 = vst [vmem:[%s275] sm:$0xff] %v1165
        %1174 = vst [vmem:[%s275 + $0x8] sm:$0xff] %v1166
        %1175 = vst [vmem:[%s275 + $0x10] sm:$0xff] %v1167
        %1176 = vst [vmem:[%s275 + $0x18] sm:$0xff] %v1168
        %1177 = vst [vmem:[%s275 + $0x20] sm:$0xff] %v1169
        %1178 = vst [vmem:[%s275 + $0x28] sm:$0xff] %v1170
        %1179 = vst [vmem:[%s275 + $0x30] sm:$0xff] %v1171
        %1180 = vst [vmem:[%s275 + $0x38] sm:$0xff] %v1172
        %s1181 = sand.u32 %s162, 1
        %s1182 = scalar_lea.sflag [#allocation8], %s1181
        %s1183 = sand.u32 %s162, 1
        %s1184 = smul.addr %s1183, 64
        %s1185 = scalar_lea.vmem [#allocation9], %s1184
        // Predicated region
        $region49: #{tpu_custom_call.1} parent=39 // pred_check
          %p1186 = pneg %p172
        $region50: #{tpu_custom_call.1} parent=39 // pred_check_branch
          %1188 = sbr.rel (%p1186) target = $region52
        $region51: #{tpu_custom_call.1} parent=39 // pred_region
          %s1190 = ssub.s32 1024, 1024
          %1191 = vsyncadd %s1182, %s1190
          %s1192 = smul.addr %s27, 16
          %s1193 = sadd.s32 %s28, %s1192
          %s1194 = smul.addr %s1193, 128
          %s1195 = scalar_lea.hbm %s5, %s1194
          %s1196 = sshll.u32 %s1185, 4
          %s1197 = int_to_ptr.vmem [resolvable:$true] %s1196
          %1202 = dma.vmem_to_hbm [thread:$0]  %s1197, 1024, %s1195, %s1182, 128, 256, 8
        $region52: #{tpu_custom_call.1} parent=39 // pred_fallthru
          _
      $region40: #{tpu_custom_call.1} parent=5 // pred_fallthru
        _
      %p1203 = scmp.le.s32.totalorder 2, %s18
      // Predicated region
      $region53: #{tpu_custom_call.1} parent=5 // pred_check
        %p1204 = pneg %p1203
      $region54: #{tpu_custom_call.1} parent=5 // pred_check_branch
        %1206 = sbr.rel (%p1204) target = $region56
      $region55: #{tpu_custom_call.1} parent=5 // pred_region
        %s1207 = ssub.s32 %s18, 2
        // Predicated region
        $region57: #{tpu_custom_call.1} parent=55 // pred_check
          %p1208 = pneg %p178
        $region58: #{tpu_custom_call.1} parent=55 // pred_check_branch
          %1210 = sbr.rel (%p1208) target = $region60
        $region59: #{tpu_custom_call.1} parent=55 // pred_region
          %s1211 = sand.u32 %s163, 1
          %s1212 = scalar_lea.sflag [#allocation8], %s1211
          %s1213 = sand.u32 %s163, 1
          %s1214 = smul.addr %s1213, 64
          %s1215 = scalar_lea.vmem [#allocation9], %s1214
          %1216 = dma.done %s1212, 1024
        $region60: #{tpu_custom_call.1} parent=55 // pred_fallthru
          _
      $region56: #{tpu_custom_call.1} parent=5 // pred_fallthru
        _
    $region6: #{tpu_custom_call.1} parent=1 // loop_footer
      %s22 = sadd.s32 1, %s18
    $region7: #{tpu_custom_call.1} parent=1 // loop_footer_branch
      %17 = sbr.rel target = $region3
    $region8: #{tpu_custom_call.1} parent=1 // loop_exit
      _
    %1217 = vsyncpa [#allocation7], 1
    %s1218 = scalar_lea.sflag [#allocation7], 1
    %1219 = vsyncpa %s1218, 1
    %1220 = vsyncpa [#allocation8], 1
    %s1221 = scalar_lea.sflag [#allocation8], 1
    %1222 = vsyncpa %s1221, 1

</llo_original>
